<compile_context>
chip_gen: v5e
topology: v5e:2x2
jax: 0.10.0
libtpu: 0.0.40
codegen_flags: <defaults>
</compile_context>

<pallas_src>
import functools
import math

import jax
import jax.numpy as jnp
from jax.experimental import pallas as pl
from jax.experimental.pallas import tpu as pltpu

NEG_SLOPE = 0.01  # PyTorch nn.LeakyReLU default


def _leaky_relu(x):
    # Exact for 0 < slope < 1; single VALU max instead of cmp+select.
    return jnp.maximum(x, NEG_SLOPE * x)


def _round_up(x, m):
    return ((x + m - 1) // m) * m


def _default_elementwise_dtype():
    """bf16 elementwise on chips with a bf16 VPU (v6e / v7x), f32 otherwise."""
    try:
        kind = jax.devices()[0].device_kind.lower()
    except Exception:
        return jnp.float32
    if "v6" in kind or "v7" in kind:
        return jnp.bfloat16
    return jnp.float32


def critic_kernel(x_ref, w1_ref, b1_ref, w2_ref, b2_ref, w3_ref, b3_ref,
                  o_ref, *, ew_dtype):
    """Transposed MLP: x^T (F, TB) -> q^T (1, TB); batch on the lane axis."""
    # Layer 1: h1^T = W1^T @ x^T   (bf16 MXU, f32 accumulate).
    h1 = jnp.dot(w1_ref[...], x_ref[...], preferred_element_type=jnp.float32)
    h1 = _leaky_relu(h1.astype(ew_dtype) + b1_ref[...])

    # Layer 2: dominant (H2, H1) @ (H1, TB) matmul on the MXU.
    h2 = jnp.dot(w2_ref[...], h1.astype(jnp.bfloat16),
                 preferred_element_type=jnp.float32)
    h2 = _leaky_relu(h2.astype(ew_dtype) + b2_ref[...])

    # Layer 3 (out_features == 1): elementwise multiply + sublane reduction
    # (XLU slot) instead of an M=1 MXU matmul; result is lane-dense (1, TB).
    q = jnp.sum(h2.astype(jnp.float32) * w3_ref[...], axis=0, keepdims=True)
    o_ref[...] = (q + b3_ref[0, 0]).astype(o_ref.dtype)


def critic_forward(state, action, params, *, tb_max=4096, elementwise_dtype=None):
    """state: (B, state_dim), action: (B, action_dim) -> (B, 1) float32."""
    assert state.ndim == 2 and action.ndim == 2
    assert state.shape[0] == action.shape[0]
    assert tb_max % 128 == 0
    (w1, b1), (w2, b2), (w3, b3) = params

    B, S = state.shape
    A = action.shape[1]
    F = S + A
    H1 = w1.shape[1]
    H2 = w2.shape[1]
    assert w1.shape[0] == F and w2.shape[0] == H1 and w3.shape == (H2, 1)

    ew_dtype = elementwise_dtype if elementwise_dtype is not None else _default_elementwise_dtype()

    # ---- batch tiling -----------------------------------------------------
    # Small batches: a single tile (block == full array, so any multiple of 8
    # is a legal lane extent). Large batches: lane-dense tiles (multiple of
    # 128) capped at tb_max, split into >= 2 tiles so the "parallel" batch
    # axis can shard across v7x's two TensorCores.
    B8 = _round_up(B, 8)
    if B8 <= 256:
        tb, num_tiles = B8, 1
    else:
        tb = min(tb_max, _round_up(-(-B8 // 2), 128))
        num_tiles = -(-B8 // tb)
        tb = min(tb, _round_up(-(-B8 // num_tiles), 128))
    B_pad = tb * num_tiles

    # ---- one-time input / weight prep (wrapper-side, not per grid step) ----
    x = jnp.concatenate([state, action], axis=1).astype(jnp.bfloat16)   # (B, F)
    x = jnp.pad(x, ((0, B_pad - B), (0, 0)))
    xt = x.T                                                            # (F, B_pad)

    w1t = w1.T.astype(jnp.bfloat16)                 # (H1, F)
    w2t = w2.T.astype(jnp.bfloat16)                 # (H2, H1)
    b1c = b1.reshape(H1, 1).astype(ew_dtype)
    b2c = b2.reshape(H2, 1).astype(ew_dtype)
    w3c = w3.reshape(H2, 1).astype(jnp.float32)     # kept f32 for the final reduce
    b3r = b3.reshape(1, 1).astype(jnp.float32)

    def resident(shape):
        # Constant index_map -> stays resident in VMEM across grid steps.
        # (Default double-buffering of these ~140 KB of weights is accepted.)
        return pl.BlockSpec(shape, lambda i: (0, 0))

    kernel = functools.partial(critic_kernel, ew_dtype=ew_dtype)

    out = pl.pallas_call(
        kernel,
        out_shape=jax.ShapeDtypeStruct((1, B_pad), jnp.float32),
        grid=(num_tiles,),
        in_specs=[
            pl.BlockSpec((F, tb), lambda i: (0, i)),      # x^T batch tile (bf16)
            resident((H1, F)),                            # W1^T (bf16)
            resident((H1, 1)),                            # b1 column
            resident((H2, H1)),                           # W2^T (bf16)
            resident((H2, 1)),                            # b2 column
            resident((H2, 1)),                            # W3 column (f32)
            pl.BlockSpec((1, 1), lambda i: (0, 0),
                         memory_space=pltpu.MemorySpace.SMEM),  # b3 scalar
        ],
        out_specs=pl.BlockSpec((1, tb), lambda i: (0, i)),
        compiler_params=pltpu.CompilerParams(
            dimension_semantics=("parallel",),
            vmem_limit_bytes=48 * 1024 * 1024,
        ),
    )(xt, w1t, b1c, w2t, b2c, w3c, b3r)

    return out[0, :B].reshape(B, 1)


def init_critic_params(key, state_dim, action_dim, layers=(256, 256)):
    """Deterministic init mimicking PyTorch nn.Linear default (U[-1/sqrt(fan_in), +])."""
    dims = [state_dim + action_dim, *layers, 1]
    params = []
    for i in range(len(dims) - 1):
        fan_in, fan_out = dims[i], dims[i + 1]
        bound = 1.0 / math.sqrt(fan_in)
        key, kw, kb = jax.random.split(key, 3)
        # stored as (in, out) so the math is x @ W
        w = jax.random.uniform(kw, (fan_in, fan_out), jnp.float32, -bound, bound)
        b = jax.random.uniform(kb, (fan_out,), jnp.float32, -bound, bound)
        params.append((w, b))
    return params


def critic_reference_f32(state, action, params):
    """Plain-JAX fp32 reference (module semantics)."""
    x = jnp.concatenate([state, action], axis=1).astype(jnp.float32)
    (w1, b1), (w2, b2), (w3, b3) = params
    h1 = _leaky_relu(x @ w1 + b1)
    h2 = _leaky_relu(h1 @ w2 + b2)
    return h2 @ w3 + b3


def critic_reference_lowp(state, action, params, ew_dtype):
    """Mirrors the kernel's mixed precision (bf16 MXU, ew_dtype elementwise)."""
    (w1, b1), (w2, b2), (w3, b3) = params
    x = jnp.concatenate([state, action], axis=1).astype(jnp.bfloat16)
    h1 = jnp.dot(x, w1.astype(jnp.bfloat16), preferred_element_type=jnp.float32)
    h1 = _leaky_relu(h1.astype(ew_dtype) + b1.astype(ew_dtype))
    h2 = jnp.dot(h1.astype(jnp.bfloat16), w2.astype(jnp.bfloat16),
                 preferred_element_type=jnp.float32)
    h2 = _leaky_relu(h2.astype(ew_dtype) + b2.astype(ew_dtype))
    q = jnp.sum(h2.astype(jnp.float32) * w3.reshape(1, -1), axis=-1, keepdims=True)
    return q + b3.reshape(1, 1)


if __name__ == "__main__":
    STATE_DIM, ACTION_DIM, BATCH = 12, 4, 2

    key = jax.random.PRNGKey(0)
    kp, ks, ka = jax.random.split(key, 3)

    params = init_critic_params(kp, STATE_DIM, ACTION_DIM, layers=(256, 256))
    state = jax.random.normal(ks, (BATCH, STATE_DIM), jnp.float32)
    action = jax.random.normal(ka, (BATCH, ACTION_DIM), jnp.float32)

    ew = _default_elementwise_dtype()

    q = jax.block_until_ready(critic_forward(state, action, params))
    assert q.shape == (BATCH, 1)

    q_lowp = critic_reference_lowp(state, action, params, ew)
    q_f32 = critic_reference_f32(state, action, params)
    assert jnp.allclose(q, q_lowp, atol=2e-2, rtol=2e-2), (q, q_lowp)
    assert jnp.allclose(q, q_f32, atol=1.5e-1, rtol=1.5e-1), (q, q_f32)

    # Exercise a multi-step batch grid (lane-dense 128-wide tiles, ragged batch).
    B2 = 300
    s2 = jax.random.normal(jax.random.PRNGKey(1), (B2, STATE_DIM), jnp.float32)
    a2 = jax.random.normal(jax.random.PRNGKey(2), (B2, ACTION_DIM), jnp.float32)
    q2 = jax.block_until_ready(critic_forward(s2, a2, params, tb_max=128))
    q2_ref = critic_reference_lowp(s2, a2, params, ew)
    assert q2.shape == (B2, 1)
    assert jnp.allclose(q2, q2_ref, atol=2e-2, rtol=2e-2), (q2, q2_ref)

    print("KERNEL_OK")
</pallas_src>

<mosaic_0001>
module attributes {stable_mosaic.version = 11 : i64} {
  func.func @critic_kernel(%arg0: i32, %arg1: memref<16x8xbf16, #tpu.memory_space<vmem>>, %arg2: memref<256x16xbf16, #tpu.memory_space<vmem>>, %arg3: memref<256x1xf32, #tpu.memory_space<vmem>>, %arg4: memref<256x256xbf16, #tpu.memory_space<vmem>>, %arg5: memref<256x1xf32, #tpu.memory_space<vmem>>, %arg6: memref<256x1xf32, #tpu.memory_space<vmem>>, %arg7: memref<1x1xf32, #tpu.memory_space<smem>>, %arg8: memref<1x8xf32, #tpu.memory_space<vmem>>) attributes {dimension_semantics = [#tpu.dimension_semantics<parallel>], iteration_bounds = array<i64: 1>, scalar_prefetch = 0 : i64, scratch_operands = 0 : i64, tpu.core_type = #tpu.core_type<tc>, window_params = [{transform_indices = @transform_0, window_bounds = array<i64: 16, 8>}, {pipeline_mode = #tpu.pipeline_mode<synchronous>, transform_indices = @transform_1, window_bounds = array<i64: 256, 16>}, {pipeline_mode = #tpu.pipeline_mode<synchronous>, transform_indices = @transform_2, window_bounds = array<i64: 256, 1>}, {pipeline_mode = #tpu.pipeline_mode<synchronous>, transform_indices = @transform_3, window_bounds = array<i64: 256, 256>}, {pipeline_mode = #tpu.pipeline_mode<synchronous>, transform_indices = @transform_4, window_bounds = array<i64: 256, 1>}, {pipeline_mode = #tpu.pipeline_mode<synchronous>, transform_indices = @transform_5, window_bounds = array<i64: 256, 1>}, {transform_indices = @transform_6, window_bounds = array<i64: 1, 1>}, {transform_indices = @transform_7, window_bounds = array<i64: 1, 8>}]} {
    %c0 = arith.constant 0 : index
    %c0_0 = arith.constant 0 : index
    %0 = vector.load %arg2[%c0, %c0_0] : memref<256x16xbf16, #tpu.memory_space<vmem>>, vector<256x16xbf16>
    %c0_1 = arith.constant 0 : index
    %c0_2 = arith.constant 0 : index
    %1 = vector.load %arg1[%c0_1, %c0_2] : memref<16x8xbf16, #tpu.memory_space<vmem>>, vector<16x8xbf16>
    %cst = arith.constant dense<0.000000e+00> : vector<256x8xf32>
    %2 = tpu.matmul %0, %1, %cst {dimension_numbers = #tpu.dot_dimension_numbers<[1], [0], [0], [1], [0, 0, 1, 1], [], []>} : vector<256x16xbf16>, vector<16x8xbf16>, vector<256x8xf32> -> vector<256x8xf32>
    %c0_3 = arith.constant 0 : index
    %c0_4 = arith.constant 0 : index
    %3 = vector.load %arg3[%c0_3, %c0_4] : memref<256x1xf32, #tpu.memory_space<vmem>>, vector<256x1xf32>
    %4 = vector.broadcast %3 : vector<256x1xf32> to vector<256x8xf32>
    %5 = arith.addf %2, %4 : vector<256x8xf32>
    %cst_5 = arith.constant 0.00999999977 : f32
    %6 = vector.broadcast %cst_5 : f32 to vector<256x8xf32>
    %7 = arith.mulf %6, %5 : vector<256x8xf32>
    %8 = arith.maximumf %5, %7 : vector<256x8xf32>
    %c0_6 = arith.constant 0 : index
    %c0_7 = arith.constant 0 : index
    %9 = vector.load %arg4[%c0_6, %c0_7] : memref<256x256xbf16, #tpu.memory_space<vmem>>, vector<256x256xbf16>
    %10 = arith.truncf %8 : vector<256x8xf32> to vector<256x8xbf16>
    %cst_8 = arith.constant dense<0.000000e+00> : vector<256x8xf32>
    %11 = tpu.matmul %9, %10, %cst_8 {dimension_numbers = #tpu.dot_dimension_numbers<[1], [0], [0], [1], [0, 0, 1, 1], [], []>} : vector<256x256xbf16>, vector<256x8xbf16>, vector<256x8xf32> -> vector<256x8xf32>
    %c0_9 = arith.constant 0 : index
    %c0_10 = arith.constant 0 : index
    %12 = vector.load %arg5[%c0_9, %c0_10] : memref<256x1xf32, #tpu.memory_space<vmem>>, vector<256x1xf32>
    %13 = vector.broadcast %12 : vector<256x1xf32> to vector<256x8xf32>
    %14 = arith.addf %11, %13 : vector<256x8xf32>
    %cst_11 = arith.constant 0.00999999977 : f32
    %15 = vector.broadcast %cst_11 : f32 to vector<256x8xf32>
    %16 = arith.mulf %15, %14 : vector<256x8xf32>
    %17 = arith.maximumf %14, %16 : vector<256x8xf32>
    %c0_12 = arith.constant 0 : index
    %c0_13 = arith.constant 0 : index
    %18 = vector.load %arg6[%c0_12, %c0_13] : memref<256x1xf32, #tpu.memory_space<vmem>>, vector<256x1xf32>
    %19 = vector.broadcast %18 : vector<256x1xf32> to vector<256x8xf32>
    %20 = arith.mulf %17, %19 : vector<256x8xf32>
    %cst_14 = arith.constant dense<0.000000e+00> : vector<8xf32>
    %21 = vector.multi_reduction <add>, %20, %cst_14 [0] : vector<256x8xf32> to vector<8xf32>
    %22 = vector.shape_cast %21 : vector<8xf32> to vector<1x8xf32>
    %c0_15 = arith.constant 0 : index
    %c0_16 = arith.constant 0 : index
    %23 = memref.load %arg7[%c0_15, %c0_16] : memref<1x1xf32, #tpu.memory_space<smem>>
    %24 = vector.broadcast %23 : f32 to vector<1x8xf32>
    %25 = arith.addf %22, %24 : vector<1x8xf32>
    %c0_17 = arith.constant 0 : index
    %c0_18 = arith.constant 0 : index
    %26 = vector.load %arg8[%c0_17, %c0_18] : memref<1x8xf32, #tpu.memory_space<vmem>>, vector<1x8xf32>
    tpu.vector_store %arg8[%c0_17, %c0_18], %25 {strides = array<i32>} : memref<1x8xf32, #tpu.memory_space<vmem>>, vector<1x8xf32>,
    return
  }
  func.func @transform_0(%arg0: i32) -> (i32, i32) {
    %c0_i32 = arith.constant 0 : i32
    %c0_i32_0 = arith.constant 0 : i32
    return %c0_i32, %arg0 : i32, i32
  }
  func.func @transform_1(%arg0: i32) -> (i32, i32) {
    %c0_i32 = arith.constant 0 : i32
    %c0_i32_0 = arith.constant 0 : i32
    %c0_i32_1 = arith.constant 0 : i32
    return %c0_i32, %c0_i32_0 : i32, i32
  }
  func.func @transform_2(%arg0: i32) -> (i32, i32) {
    %c0_i32 = arith.constant 0 : i32
    %c0_i32_0 = arith.constant 0 : i32
    %c0_i32_1 = arith.constant 0 : i32
    return %c0_i32, %c0_i32_0 : i32, i32
  }
  func.func @transform_3(%arg0: i32) -> (i32, i32) {
    %c0_i32 = arith.constant 0 : i32
    %c0_i32_0 = arith.constant 0 : i32
    %c0_i32_1 = arith.constant 0 : i32
    return %c0_i32, %c0_i32_0 : i32, i32
  }
  func.func @transform_4(%arg0: i32) -> (i32, i32) {
    %c0_i32 = arith.constant 0 : i32
    %c0_i32_0 = arith.constant 0 : i32
    %c0_i32_1 = arith.constant 0 : i32
    return %c0_i32, %c0_i32_0 : i32, i32
  }
  func.func @transform_5(%arg0: i32) -> (i32, i32) {
    %c0_i32 = arith.constant 0 : i32
    %c0_i32_0 = arith.constant 0 : i32
    %c0_i32_1 = arith.constant 0 : i32
    return %c0_i32, %c0_i32_0 : i32, i32
  }
  func.func @transform_6(%arg0: i32) -> (i32, i32) {
    %c0_i32 = arith.constant 0 : i32
    %c0_i32_0 = arith.constant 0 : i32
    %c0_i32_1 = arith.constant 0 : i32
    return %c0_i32, %c0_i32_0 : i32, i32
  }
  func.func @transform_7(%arg0: i32) -> (i32, i32) {
    %c0_i32 = arith.constant 0 : i32
    %c0_i32_0 = arith.constant 0 : i32
    return %c0_i32, %arg0 : i32, i32
  }
}

</mosaic_0001>

<llo_original>
// kernel: tpu_custom_call.1
$region0: #{tpu_custom_call.1}
  #allocation0 [shape = 'u32[]', space=smem, size = 0x4, offset = 0x4, fixed_abs, tag = 'smem constant byte address 0x4 - core index']
  #allocation1 [shape = 'u32[72,128]{1,0:T(1,128)}', space=vmem, size = 0x9000, scoped, tag = 'internal scratch']
  #allocation2 [shape = 'f32[1,1]{1,0:T(1,128)S(6)}', space=smem, size = 0x200, scoped, tag = 'scoped memory for tpu_custom_call.1']
  %s0 = inlined_call_operand.vmem [shape: bf16[16,8], index: 0, kind: input, shape index: {}]
  %s1 = inlined_call_operand.vmem [shape: bf16[256,16], index: 1, kind: input, shape index: {}]
  %s2 = inlined_call_operand.vmem [shape: f32[256,1], index: 2, kind: input, shape index: {}]
  %s3 = inlined_call_operand.vmem [shape: bf16[256,256], index: 3, kind: input, shape index: {}]
  %s4 = inlined_call_operand.vmem [shape: f32[256,1], index: 4, kind: input, shape index: {}]
  %s5 = inlined_call_operand.vmem [shape: f32[256,1], index: 5, kind: input, shape index: {}]
  %s6 = inlined_call_operand.<no memory space> [shape: f32[1,1], index: 6, kind: input, shape index: {}]
  %s7 = inlined_call_operand.hbm [shape: f32[1,8], index: 7, kind: output, shape index: {}]
  %s8 = sld [smem:[#allocation0]]
  $region38: #{tpu_custom_call.1} parent=0
    _
  %s10 = ssub.s32 1, %s8
  %s11 = scalar_select 0, %s10, %s8
  %12 = sst [smem:[#allocation2]] %s6
  $region1: #{tpu_custom_call.1} parent=0
    #allocation3 [shape = 'u8[512]{0}', space=vmem, size = 0x400, scoped, tag = 'output window, operand 0, single buffered']
    #allocation4 [shape = 's32[1]{0}', space=sflag, size = 0x4, scoped, tag = 'scoped memory for tpu_custom_call.1']
    %13 = vsyncpa [#allocation4], 0
    // Predicated region
    $region2: #{tpu_custom_call.1} parent=1 // pred_check
      _
    $region3: #{tpu_custom_call.1} parent=1 // pred_check_branch
      %15 = sbr.rel (0) target = $region5
    $region4: #{tpu_custom_call.1} parent=1 // pred_region
      _
    $region5: #{tpu_custom_call.1} parent=1 // pred_fallthru
      _
    // Predicated region
    $region6: #{tpu_custom_call.1} parent=1 // pred_check
      _
    $region7: #{tpu_custom_call.1} parent=1 // pred_check_branch
      %17 = sbr.rel (0) target = $region9
    $region8: #{tpu_custom_call.1} parent=1 // pred_region
      _
    $region9: #{tpu_custom_call.1} parent=1 // pred_fallthru
      _
    // Predicated region
    $region10: #{tpu_custom_call.1} parent=1 // pred_check
      _
    $region11: #{tpu_custom_call.1} parent=1 // pred_check_branch
      %19 = sbr.rel (0) target = $region13
    $region12: #{tpu_custom_call.1} parent=1 // pred_region
      _
    $region13: #{tpu_custom_call.1} parent=1 // pred_fallthru
      _
    // Predicated region
    $region14: #{tpu_custom_call.1} parent=1 // pred_check
      _
    $region15: #{tpu_custom_call.1} parent=1 // pred_check_branch
      %21 = sbr.rel (0) target = $region17
    $region16: #{tpu_custom_call.1} parent=1 // pred_region
      _
    $region17: #{tpu_custom_call.1} parent=1 // pred_fallthru
      _
    // Predicated region
    $region18: #{tpu_custom_call.1} parent=1 // pred_check
      _
    $region19: #{tpu_custom_call.1} parent=1 // pred_check_branch
      %23 = sbr.rel (0) target = $region21
    $region20: #{tpu_custom_call.1} parent=1 // pred_region
      _
    $region21: #{tpu_custom_call.1} parent=1 // pred_fallthru
      _
    // Predicated region
    $region22: #{tpu_custom_call.1} parent=1 // pred_check
      _
    $region23: #{tpu_custom_call.1} parent=1 // pred_check_branch
      %25 = sbr.rel (0) target = $region25
    $region24: #{tpu_custom_call.1} parent=1 // pred_region
      _
    $region25: #{tpu_custom_call.1} parent=1 // pred_fallthru
      _
    // Predicated region
    $region26: #{tpu_custom_call.1} parent=1 // pred_check
      _
    $region27: #{tpu_custom_call.1} parent=1 // pred_check_branch
      %27 = sbr.rel (0) target = $region29
    $region28: #{tpu_custom_call.1} parent=1 // pred_region
      _
    $region29: #{tpu_custom_call.1} parent=1 // pred_fallthru
      _
    %v29 = vld [vmem:[%s1] sm:$0xf]
    %v30 = vld [vmem:[%s1 + $0x4] sm:$0xf]
    %v31 = vld [vmem:[%s1 + $0x8] sm:$0xf]
    %v32 = vld [vmem:[%s1 + $0xc] sm:$0xf]
    %v33 = vld [vmem:[%s1 + $0x10] sm:$0xf]
    %v34 = vld [vmem:[%s1 + $0x14] sm:$0xf]
    %v35 = vld [vmem:[%s1 + $0x18] sm:$0xf]
    %v36 = vld [vmem:[%s1 + $0x1c] sm:$0xf]
    %v37 = vld [vmem:[%s1 + $0x20] sm:$0xf]
    %v38 = vld [vmem:[%s1 + $0x24] sm:$0xf]
    %v39 = vld [vmem:[%s1 + $0x28] sm:$0xf]
    %v40 = vld [vmem:[%s1 + $0x2c] sm:$0xf]
    %v41 = vld [vmem:[%s1 + $0x30] sm:$0xf]
    %v42 = vld [vmem:[%s1 + $0x34] sm:$0xf]
    %v43 = vld [vmem:[%s1 + $0x38] sm:$0xf]
    %v44 = vld [vmem:[%s1 + $0x3c] sm:$0xf]
    %v45 = vld [vmem:[%s1 + $0x40] sm:$0xf]
    %v46 = vld [vmem:[%s1 + $0x44] sm:$0xf]
    %v47 = vld [vmem:[%s1 + $0x48] sm:$0xf]
    %v48 = vld [vmem:[%s1 + $0x4c] sm:$0xf]
    %v49 = vld [vmem:[%s1 + $0x50] sm:$0xf]
    %v50 = vld [vmem:[%s1 + $0x54] sm:$0xf]
    %v51 = vld [vmem:[%s1 + $0x58] sm:$0xf]
    %v52 = vld [vmem:[%s1 + $0x5c] sm:$0xf]
    %v53 = vld [vmem:[%s1 + $0x60] sm:$0xf]
    %v54 = vld [vmem:[%s1 + $0x64] sm:$0xf]
    %v55 = vld [vmem:[%s1 + $0x68] sm:$0xf]
    %v56 = vld [vmem:[%s1 + $0x6c] sm:$0xf]
    %v57 = vld [vmem:[%s1 + $0x70] sm:$0xf]
    %v58 = vld [vmem:[%s1 + $0x74] sm:$0xf]
    %v59 = vld [vmem:[%s1 + $0x78] sm:$0xf]
    %v60 = vld [vmem:[%s1 + $0x7c] sm:$0xf]
    %v61 = vld [vmem:[%s0] sm:$0xf]
    %v62 = vld [vmem:[%s0 + $0x4] sm:$0xf]
    %v63 = vld [vmem:[%s2] sm:$0xff]
    %v64 = vld [vmem:[%s2 + $0x8] sm:$0xff]
    %v65 = vld [vmem:[%s2 + $0x10] sm:$0xff]
    %v66 = vld [vmem:[%s2 + $0x18] sm:$0xff]
    %v67 = vld [vmem:[%s2 + $0x20] sm:$0xff]
    %v68 = vld [vmem:[%s2 + $0x28] sm:$0xff]
    %v69 = vld [vmem:[%s2 + $0x30] sm:$0xff]
    %v70 = vld [vmem:[%s2 + $0x38] sm:$0xff]
    %v71 = vld [vmem:[%s2 + $0x40] sm:$0xff]
    %v72 = vld [vmem:[%s2 + $0x48] sm:$0xff]
    %v73 = vld [vmem:[%s2 + $0x50] sm:$0xff]
    %v74 = vld [vmem:[%s2 + $0x58] sm:$0xff]
    %v75 = vld [vmem:[%s2 + $0x60] sm:$0xff]
    %v76 = vld [vmem:[%s2 + $0x68] sm:$0xff]
    %v77 = vld [vmem:[%s2 + $0x70] sm:$0xff]
    %v78 = vld [vmem:[%s2 + $0x78] sm:$0xff]
    %v79 = vld [vmem:[%s2 + $0x80] sm:$0xff]
    %v80 = vld [vmem:[%s2 + $0x88] sm:$0xff]
    %v81 = vld [vmem:[%s2 + $0x90] sm:$0xff]
    %v82 = vld [vmem:[%s2 + $0x98] sm:$0xff]
    %v83 = vld [vmem:[%s2 + $0xa0] sm:$0xff]
    %v84 = vld [vmem:[%s2 + $0xa8] sm:$0xff]
    %v85 = vld [vmem:[%s2 + $0xb0] sm:$0xff]
    %v86 = vld [vmem:[%s2 + $0xb8] sm:$0xff]
    %v87 = vld [vmem:[%s2 + $0xc0] sm:$0xff]
    %v88 = vld [vmem:[%s2 + $0xc8] sm:$0xff]
    %v89 = vld [vmem:[%s2 + $0xd0] sm:$0xff]
    %v90 = vld [vmem:[%s2 + $0xd8] sm:$0xff]
    %v91 = vld [vmem:[%s2 + $0xe0] sm:$0xff]
    %v92 = vld [vmem:[%s2 + $0xe8] sm:$0xff]
    %v93 = vld [vmem:[%s2 + $0xf0] sm:$0xff]
    %v94 = vld [vmem:[%s2 + $0xf8] sm:$0xff]
    %96 = vset.pattern.permute.xlu0 0
    %97 = vperm.xlu0 %96, %v63
    %v98 = vpop.permute.xlu0 %97
    %101 = vset.pattern.permute.xlu0 0
    %102 = vperm.xlu0 %101, %v64
    %v103 = vpop.permute.xlu0 %102
    %106 = vset.pattern.permute.xlu0 0
    %107 = vperm.xlu0 %106, %v65
    %v108 = vpop.permute.xlu0 %107
    %111 = vset.pattern.permute.xlu0 0
    %112 = vperm.xlu0 %111, %v66
    %v113 = vpop.permute.xlu0 %112
    %116 = vset.pattern.permute.xlu0 0
    %117 = vperm.xlu0 %116, %v67
    %v118 = vpop.permute.xlu0 %117
    %121 = vset.pattern.permute.xlu0 0
    %122 = vperm.xlu0 %121, %v68
    %v123 = vpop.permute.xlu0 %122
    %126 = vset.pattern.permute.xlu0 0
    %127 = vperm.xlu0 %126, %v69
    %v128 = vpop.permute.xlu0 %127
    %131 = vset.pattern.permute.xlu0 0
    %132 = vperm.xlu0 %131, %v70
    %v133 = vpop.permute.xlu0 %132
    %136 = vset.pattern.permute.xlu0 0
    %137 = vperm.xlu0 %136, %v71
    %v138 = vpop.permute.xlu0 %137
    %141 = vset.pattern.permute.xlu0 0
    %142 = vperm.xlu0 %141, %v72
    %v143 = vpop.permute.xlu0 %142
    %146 = vset.pattern.permute.xlu0 0
    %147 = vperm.xlu0 %146, %v73
    %v148 = vpop.permute.xlu0 %147
    %151 = vset.pattern.permute.xlu0 0
    %152 = vperm.xlu0 %151, %v74
    %v153 = vpop.permute.xlu0 %152
    %156 = vset.pattern.permute.xlu0 0
    %157 = vperm.xlu0 %156, %v75
    %v158 = vpop.permute.xlu0 %157
    %161 = vset.pattern.permute.xlu0 0
    %162 = vperm.xlu0 %161, %v76
    %v163 = vpop.permute.xlu0 %162
    %166 = vset.pattern.permute.xlu0 0
    %167 = vperm.xlu0 %166, %v77
    %v168 = vpop.permute.xlu0 %167
    %171 = vset.pattern.permute.xlu0 0
    %172 = vperm.xlu0 %171, %v78
    %v173 = vpop.permute.xlu0 %172
    %176 = vset.pattern.permute.xlu0 0
    %177 = vperm.xlu0 %176, %v79
    %v178 = vpop.permute.xlu0 %177
    %181 = vset.pattern.permute.xlu0 0
    %182 = vperm.xlu0 %181, %v80
    %v183 = vpop.permute.xlu0 %182
    %186 = vset.pattern.permute.xlu0 0
    %187 = vperm.xlu0 %186, %v81
    %v188 = vpop.permute.xlu0 %187
    %191 = vset.pattern.permute.xlu0 0
    %192 = vperm.xlu0 %191, %v82
    %v193 = vpop.permute.xlu0 %192
    %196 = vset.pattern.permute.xlu0 0
    %197 = vperm.xlu0 %196, %v83
    %v198 = vpop.permute.xlu0 %197
    %201 = vset.pattern.permute.xlu0 0
    %202 = vperm.xlu0 %201, %v84
    %v203 = vpop.permute.xlu0 %202
    %206 = vset.pattern.permute.xlu0 0
    %207 = vperm.xlu0 %206, %v85
    %v208 = vpop.permute.xlu0 %207
    %211 = vset.pattern.permute.xlu0 0
    %212 = vperm.xlu0 %211, %v86
    %v213 = vpop.permute.xlu0 %212
    %216 = vset.pattern.permute.xlu0 0
    %217 = vperm.xlu0 %216, %v87
    %v218 = vpop.permute.xlu0 %217
    %221 = vset.pattern.permute.xlu0 0
    %222 = vperm.xlu0 %221, %v88
    %v223 = vpop.permute.xlu0 %222
    %226 = vset.pattern.permute.xlu0 0
    %227 = vperm.xlu0 %226, %v89
    %v228 = vpop.permute.xlu0 %227
    %231 = vset.pattern.permute.xlu0 0
    %232 = vperm.xlu0 %231, %v90
    %v233 = vpop.permute.xlu0 %232
    %236 = vset.pattern.permute.xlu0 0
    %237 = vperm.xlu0 %236, %v91
    %v238 = vpop.permute.xlu0 %237
    %241 = vset.pattern.permute.xlu0 0
    %242 = vperm.xlu0 %241, %v92
    %v243 = vpop.permute.xlu0 %242
    %246 = vset.pattern.permute.xlu0 0
    %247 = vperm.xlu0 %246, %v93
    %v248 = vpop.permute.xlu0 %247
    %251 = vset.pattern.permute.xlu0 0
    %252 = vperm.xlu0 %251, %v94
    %v253 = vpop.permute.xlu0 %252
    %v287 = vunpack.c.l.b16 %v29
    %v288 = vunpack.c.l.b16 %v30
    %v289 = vunpack.c.l.b16 %v31
    %v290 = vunpack.c.l.b16 %v32
    %v291 = vunpack.c.l.b16 %v33
    %v292 = vunpack.c.l.b16 %v34
    %v293 = vunpack.c.l.b16 %v35
    %v294 = vunpack.c.l.b16 %v36
    %v295 = vunpack.c.l.b16 %v37
    %v296 = vunpack.c.l.b16 %v38
    %v297 = vunpack.c.l.b16 %v39
    %v298 = vunpack.c.l.b16 %v40
    %v299 = vunpack.c.l.b16 %v41
    %v300 = vunpack.c.l.b16 %v42
    %v301 = vunpack.c.l.b16 %v43
    %v302 = vunpack.c.l.b16 %v44
    %v303 = vunpack.c.l.b16 %v45
    %v304 = vunpack.c.l.b16 %v46
    %v305 = vunpack.c.l.b16 %v47
    %v306 = vunpack.c.l.b16 %v48
    %v307 = vunpack.c.l.b16 %v49
    %v308 = vunpack.c.l.b16 %v50
    %v309 = vunpack.c.l.b16 %v51
    %v310 = vunpack.c.l.b16 %v52
    %v311 = vunpack.c.l.b16 %v53
    %v312 = vunpack.c.l.b16 %v54
    %v313 = vunpack.c.l.b16 %v55
    %v314 = vunpack.c.l.b16 %v56
    %v315 = vunpack.c.l.b16 %v57
    %v316 = vunpack.c.l.b16 %v58
    %v317 = vunpack.c.l.b16 %v59
    %v318 = vunpack.c.l.b16 %v60
    %v319 = vpack.c.b16 %v288, %v287
    %v320 = vpack.c.b16 %v290, %v289
    %v321 = vpack.c.b16 %v292, %v291
    %v322 = vpack.c.b16 %v294, %v293
    %v323 = vpack.c.b16 %v296, %v295
    %v324 = vpack.c.b16 %v298, %v297
    %v325 = vpack.c.b16 %v300, %v299
    %v326 = vpack.c.b16 %v302, %v301
    %v327 = vpack.c.b16 %v304, %v303
    %v328 = vpack.c.b16 %v306, %v305
    %v329 = vpack.c.b16 %v308, %v307
    %v330 = vpack.c.b16 %v310, %v309
    %v331 = vpack.c.b16 %v312, %v311
    %v332 = vpack.c.b16 %v314, %v313
    %v333 = vpack.c.b16 %v316, %v315
    %v334 = vpack.c.b16 %v318, %v317
    %v337 = vunpack.c.l.b16 %v61
    %v338 = vunpack.c.l.b16 %v62
    %v339 = vpack.c.b16 %v338, %v337
    %vm341 = vcmask 130048
    %v343 = vsel %vm341, %v319, 0
    %v346 = vsel %vm341, %v320, 0
    %v349 = vsel %vm341, %v321, 0
    %v352 = vsel %vm341, %v322, 0
    %v355 = vsel %vm341, %v323, 0
    %v358 = vsel %vm341, %v324, 0
    %v361 = vsel %vm341, %v325, 0
    %v364 = vsel %vm341, %v326, 0
    %v367 = vsel %vm341, %v327, 0
    %v370 = vsel %vm341, %v328, 0
    %v373 = vsel %vm341, %v329, 0
    %v376 = vsel %vm341, %v330, 0
    %v379 = vsel %vm341, %v331, 0
    %v382 = vsel %vm341, %v332, 0
    %v385 = vsel %vm341, %v333, 0
    %v388 = vsel %vm341, %v334, 0
    %390 = vmatpush.bf16.msra.mxu0 0
    %391 = vmatpush.bf16.msra.mxu0 0
    %392 = vmatpush.bf16.msra.mxu0 0
    %393 = vmatpush.bf16.msra.mxu0 0
    %394 = vmatpush.bf16.msra.mxu0 0
    %395 = vmatpush.bf16.msra.mxu0 0
    %396 = vmatpush.bf16.msra.mxu0 0
    %397 = vmatpush.bf16.msra.mxu0 %v339
    %398 = vmatmul.bf16.gmra.mxu0 %v343
    %v399 = vpop.f32.mrf.mxu0
    %v400 = vadd.f32 %v98, %v399
    %v401 = vpop.f32.mrf.mxu0
    %v402 = vadd.f32 %v103, %v401
    %403 = vmatmul.bf16.gmra.mxu0 %v346
    %v404 = vpop.f32.mrf.mxu0
    %v405 = vadd.f32 %v108, %v404
    %v406 = vpop.f32.mrf.mxu0
    %v407 = vadd.f32 %v113, %v406
    %408 = vmatmul.bf16.gmra.mxu0 %v349
    %v409 = vpop.f32.mrf.mxu0
    %v410 = vadd.f32 %v118, %v409
    %v411 = vpop.f32.mrf.mxu0
    %v412 = vadd.f32 %v123, %v411
    %413 = vmatmul.bf16.gmra.mxu0 %v352
    %v414 = vpop.f32.mrf.mxu0
    %v415 = vadd.f32 %v128, %v414
    %v416 = vpop.f32.mrf.mxu0
    %v417 = vadd.f32 %v133, %v416
    %418 = vmatmul.bf16.gmra.mxu0 %v355
    %v419 = vpop.f32.mrf.mxu0
    %v420 = vadd.f32 %v138, %v419
    %v421 = vpop.f32.mrf.mxu0
    %v422 = vadd.f32 %v143, %v421
    %423 = vmatmul.bf16.gmra.mxu0 %v358
    %v424 = vpop.f32.mrf.mxu0
    %v425 = vadd.f32 %v148, %v424
    %v426 = vpop.f32.mrf.mxu0
    %v427 = vadd.f32 %v153, %v426
    %428 = vmatmul.bf16.gmra.mxu0 %v361
    %v429 = vpop.f32.mrf.mxu0
    %v430 = vadd.f32 %v158, %v429
    %v431 = vpop.f32.mrf.mxu0
    %v432 = vadd.f32 %v163, %v431
    %433 = vmatmul.bf16.gmra.mxu0 %v364
    %v434 = vpop.f32.mrf.mxu0
    %v435 = vadd.f32 %v168, %v434
    %v436 = vpop.f32.mrf.mxu0
    %v437 = vadd.f32 %v173, %v436
    %438 = vmatmul.bf16.gmra.mxu0 %v367
    %v439 = vpop.f32.mrf.mxu0
    %v440 = vadd.f32 %v178, %v439
    %v441 = vpop.f32.mrf.mxu0
    %v442 = vadd.f32 %v183, %v441
    %443 = vmatmul.bf16.gmra.mxu0 %v370
    %v444 = vpop.f32.mrf.mxu0
    %v445 = vadd.f32 %v188, %v444
    %v446 = vpop.f32.mrf.mxu0
    %v447 = vadd.f32 %v193, %v446
    %448 = vmatmul.bf16.gmra.mxu0 %v373
    %v449 = vpop.f32.mrf.mxu0
    %v450 = vadd.f32 %v198, %v449
    %v451 = vpop.f32.mrf.mxu0
    %v452 = vadd.f32 %v203, %v451
    %453 = vmatmul.bf16.gmra.mxu0 %v376
    %v454 = vpop.f32.mrf.mxu0
    %v455 = vadd.f32 %v208, %v454
    %v456 = vpop.f32.mrf.mxu0
    %v457 = vadd.f32 %v213, %v456
    %458 = vmatmul.bf16.gmra.mxu0 %v379
    %v459 = vpop.f32.mrf.mxu0
    %v460 = vadd.f32 %v218, %v459
    %v461 = vpop.f32.mrf.mxu0
    %v462 = vadd.f32 %v223, %v461
    %463 = vmatmul.bf16.gmra.mxu0 %v382
    %v464 = vpop.f32.mrf.mxu0
    %v465 = vadd.f32 %v228, %v464
    %v466 = vpop.f32.mrf.mxu0
    %v467 = vadd.f32 %v233, %v466
    %468 = vmatmul.bf16.gmra.mxu0 %v385
    %v469 = vpop.f32.mrf.mxu0
    %v470 = vadd.f32 %v238, %v469
    %v471 = vpop.f32.mrf.mxu0
    %v472 = vadd.f32 %v243, %v471
    %473 = vmatmul.bf16.gmra.mxu0 %v388
    %v474 = vpop.f32.mrf.mxu0
    %v475 = vadd.f32 %v248, %v474
    %v476 = vpop.f32.mrf.mxu0
    %v477 = vadd.f32 %v253, %v476
    %478 = vdwg.mxu0
    %v479 = vmul.f32 %v400, 0.01
    %v480 = vmul.f32 %v402, 0.01
    %v481 = vmul.f32 %v405, 0.01
    %v482 = vmul.f32 %v407, 0.01
    %v483 = vmul.f32 %v410, 0.01
    %v484 = vmul.f32 %v412, 0.01
    %v485 = vmul.f32 %v415, 0.01
    %v486 = vmul.f32 %v417, 0.01
    %v487 = vmul.f32 %v420, 0.01
    %v488 = vmul.f32 %v422, 0.01
    %v489 = vmul.f32 %v425, 0.01
    %v490 = vmul.f32 %v427, 0.01
    %v491 = vmul.f32 %v430, 0.01
    %v492 = vmul.f32 %v432, 0.01
    %v493 = vmul.f32 %v435, 0.01
    %v494 = vmul.f32 %v437, 0.01
    %v495 = vmul.f32 %v440, 0.01
    %v496 = vmul.f32 %v442, 0.01
    %v497 = vmul.f32 %v445, 0.01
    %v498 = vmul.f32 %v447, 0.01
    %v499 = vmul.f32 %v450, 0.01
    %v500 = vmul.f32 %v452, 0.01
    %v501 = vmul.f32 %v455, 0.01
    %v502 = vmul.f32 %v457, 0.01
    %v503 = vmul.f32 %v460, 0.01
    %v504 = vmul.f32 %v462, 0.01
    %v505 = vmul.f32 %v465, 0.01
    %v506 = vmul.f32 %v467, 0.01
    %v507 = vmul.f32 %v470, 0.01
    %v508 = vmul.f32 %v472, 0.01
    %v509 = vmul.f32 %v475, 0.01
    %v510 = vmul.f32 %v477, 0.01
    %v511 = vmax.f32 %v400, %v479
    %v512 = vmax.f32 %v402, %v480
    %v513 = vmax.f32 %v405, %v481
    %v514 = vmax.f32 %v407, %v482
    %v515 = vmax.f32 %v410, %v483
    %v516 = vmax.f32 %v412, %v484
    %v517 = vmax.f32 %v415, %v485
    %v518 = vmax.f32 %v417, %v486
    %v519 = vmax.f32 %v420, %v487
    %v520 = vmax.f32 %v422, %v488
    %v521 = vmax.f32 %v425, %v489
    %v522 = vmax.f32 %v427, %v490
    %v523 = vmax.f32 %v430, %v491
    %v524 = vmax.f32 %v432, %v492
    %v525 = vmax.f32 %v435, %v493
    %v526 = vmax.f32 %v437, %v494
    %v527 = vmax.f32 %v440, %v495
    %v528 = vmax.f32 %v442, %v496
    %v529 = vmax.f32 %v445, %v497
    %v530 = vmax.f32 %v447, %v498
    %v531 = vmax.f32 %v450, %v499
    %v532 = vmax.f32 %v452, %v500
    %v533 = vmax.f32 %v455, %v501
    %v534 = vmax.f32 %v457, %v502
    %v535 = vmax.f32 %v460, %v503
    %v536 = vmax.f32 %v462, %v504
    %v537 = vmax.f32 %v465, %v505
    %v538 = vmax.f32 %v467, %v506
    %v539 = vmax.f32 %v470, %v507
    %v540 = vmax.f32 %v472, %v508
    %v541 = vmax.f32 %v475, %v509
    %v542 = vmax.f32 %v477, %v510
    %v543 = vld [vmem:[%s3] sm:$0xff]
    %v544 = vld [vmem:[%s3 + $0x8] sm:$0xff]
    %v545 = vld [vmem:[%s3 + $0x10] sm:$0xff]
    %v546 = vld [vmem:[%s3 + $0x18] sm:$0xff]
    %v547 = vld [vmem:[%s3 + $0x20] sm:$0xff]
    %v548 = vld [vmem:[%s3 + $0x28] sm:$0xff]
    %v549 = vld [vmem:[%s3 + $0x30] sm:$0xff]
    %v550 = vld [vmem:[%s3 + $0x38] sm:$0xff]
    %v551 = vld [vmem:[%s3 + $0x40] sm:$0xff]
    %v552 = vld [vmem:[%s3 + $0x48] sm:$0xff]
    %v553 = vld [vmem:[%s3 + $0x50] sm:$0xff]
    %v554 = vld [vmem:[%s3 + $0x58] sm:$0xff]
    %v555 = vld [vmem:[%s3 + $0x60] sm:$0xff]
    %v556 = vld [vmem:[%s3 + $0x68] sm:$0xff]
    %v557 = vld [vmem:[%s3 + $0x70] sm:$0xff]
    %v558 = vld [vmem:[%s3 + $0x78] sm:$0xff]
    %v559 = vld [vmem:[%s3 + $0x80] sm:$0xff]
    %v560 = vld [vmem:[%s3 + $0x88] sm:$0xff]
    %v561 = vld [vmem:[%s3 + $0x90] sm:$0xff]
    %v562 = vld [vmem:[%s3 + $0x98] sm:$0xff]
    %v563 = vld [vmem:[%s3 + $0xa0] sm:$0xff]
    %v564 = vld [vmem:[%s3 + $0xa8] sm:$0xff]
    %v565 = vld [vmem:[%s3 + $0xb0] sm:$0xff]
    %v566 = vld [vmem:[%s3 + $0xb8] sm:$0xff]
    %v567 = vld [vmem:[%s3 + $0xc0] sm:$0xff]
    %v568 = vld [vmem:[%s3 + $0xc8] sm:$0xff]
    %v569 = vld [vmem:[%s3 + $0xd0] sm:$0xff]
    %v570 = vld [vmem:[%s3 + $0xd8] sm:$0xff]
    %v571 = vld [vmem:[%s3 + $0xe0] sm:$0xff]
    %v572 = vld [vmem:[%s3 + $0xe8] sm:$0xff]
    %v573 = vld [vmem:[%s3 + $0xf0] sm:$0xff]
    %v574 = vld [vmem:[%s3 + $0xf8] sm:$0xff]
    %v575 = vpack.c.bf16 %v512, %v511
    %v576 = vpack.c.bf16 %v514, %v513
    %v577 = vpack.c.bf16 %v516, %v515
    %v578 = vpack.c.bf16 %v518, %v517
    %v579 = vpack.c.bf16 %v520, %v519
    %v580 = vpack.c.bf16 %v522, %v521
    %v581 = vpack.c.bf16 %v524, %v523
    %v582 = vpack.c.bf16 %v526, %v525
    %v583 = vpack.c.bf16 %v528, %v527
    %v584 = vpack.c.bf16 %v530, %v529
    %v585 = vpack.c.bf16 %v532, %v531
    %v586 = vpack.c.bf16 %v534, %v533
    %v587 = vpack.c.bf16 %v536, %v535
    %v588 = vpack.c.bf16 %v538, %v537
    %v589 = vpack.c.bf16 %v540, %v539
    %v590 = vpack.c.bf16 %v542, %v541
    %v591 = vld [vmem:[%s4] sm:$0xff]
    %v592 = vld [vmem:[%s4 + $0x8] sm:$0xff]
    %v593 = vld [vmem:[%s4 + $0x10] sm:$0xff]
    %v594 = vld [vmem:[%s4 + $0x18] sm:$0xff]
    %v595 = vld [vmem:[%s4 + $0x20] sm:$0xff]
    %v596 = vld [vmem:[%s4 + $0x28] sm:$0xff]
    %v597 = vld [vmem:[%s4 + $0x30] sm:$0xff]
    %v598 = vld [vmem:[%s4 + $0x38] sm:$0xff]
    %v599 = vld [vmem:[%s4 + $0x40] sm:$0xff]
    %v600 = vld [vmem:[%s4 + $0x48] sm:$0xff]
    %v601 = vld [vmem:[%s4 + $0x50] sm:$0xff]
    %v602 = vld [vmem:[%s4 + $0x58] sm:$0xff]
    %v603 = vld [vmem:[%s4 + $0x60] sm:$0xff]
    %v604 = vld [vmem:[%s4 + $0x68] sm:$0xff]
    %v605 = vld [vmem:[%s4 + $0x70] sm:$0xff]
    %v606 = vld [vmem:[%s4 + $0x78] sm:$0xff]
    %v607 = vld [vmem:[%s4 + $0x80] sm:$0xff]
    %v608 = vld [vmem:[%s4 + $0x88] sm:$0xff]
    %v609 = vld [vmem:[%s4 + $0x90] sm:$0xff]
    %v610 = vld [vmem:[%s4 + $0x98] sm:$0xff]
    %v611 = vld [vmem:[%s4 + $0xa0] sm:$0xff]
    %v612 = vld [vmem:[%s4 + $0xa8] sm:$0xff]
    %v613 = vld [vmem:[%s4 + $0xb0] sm:$0xff]
    %v614 = vld [vmem:[%s4 + $0xb8] sm:$0xff]
    %v615 = vld [vmem:[%s4 + $0xc0] sm:$0xff]
    %v616 = vld [vmem:[%s4 + $0xc8] sm:$0xff]
    %v617 = vld [vmem:[%s4 + $0xd0] sm:$0xff]
    %v618 = vld [vmem:[%s4 + $0xd8] sm:$0xff]
    %v619 = vld [vmem:[%s4 + $0xe0] sm:$0xff]
    %v620 = vld [vmem:[%s4 + $0xe8] sm:$0xff]
    %v621 = vld [vmem:[%s4 + $0xf0] sm:$0xff]
    %v622 = vld [vmem:[%s4 + $0xf8] sm:$0xff]
    %624 = vset.pattern.permute.xlu0 0
    %625 = vperm.xlu0 %624, %v591
    %v626 = vpop.permute.xlu0 %625
    %629 = vset.pattern.permute.xlu0 0
    %630 = vperm.xlu0 %629, %v592
    %v631 = vpop.permute.xlu0 %630
    %634 = vset.pattern.permute.xlu0 0
    %635 = vperm.xlu0 %634, %v593
    %v636 = vpop.permute.xlu0 %635
    %639 = vset.pattern.permute.xlu0 0
    %640 = vperm.xlu0 %639, %v594
    %v641 = vpop.permute.xlu0 %640
    %644 = vset.pattern.permute.xlu0 0
    %645 = vperm.xlu0 %644, %v595
    %v646 = vpop.permute.xlu0 %645
    %649 = vset.pattern.permute.xlu0 0
    %650 = vperm.xlu0 %649, %v596
    %v651 = vpop.permute.xlu0 %650
    %654 = vset.pattern.permute.xlu0 0
    %655 = vperm.xlu0 %654, %v597
    %v656 = vpop.permute.xlu0 %655
    %659 = vset.pattern.permute.xlu0 0
    %660 = vperm.xlu0 %659, %v598
    %v661 = vpop.permute.xlu0 %660
    %664 = vset.pattern.permute.xlu0 0
    %665 = vperm.xlu0 %664, %v599
    %v666 = vpop.permute.xlu0 %665
    %669 = vset.pattern.permute.xlu0 0
    %670 = vperm.xlu0 %669, %v600
    %v671 = vpop.permute.xlu0 %670
    %674 = vset.pattern.permute.xlu0 0
    %675 = vperm.xlu0 %674, %v601
    %v676 = vpop.permute.xlu0 %675
    %679 = vset.pattern.permute.xlu0 0
    %680 = vperm.xlu0 %679, %v602
    %v681 = vpop.permute.xlu0 %680
    %684 = vset.pattern.permute.xlu0 0
    %685 = vperm.xlu0 %684, %v603
    %v686 = vpop.permute.xlu0 %685
    %689 = vset.pattern.permute.xlu0 0
    %690 = vperm.xlu0 %689, %v604
    %v691 = vpop.permute.xlu0 %690
    %694 = vset.pattern.permute.xlu0 0
    %695 = vperm.xlu0 %694, %v605
    %v696 = vpop.permute.xlu0 %695
    %699 = vset.pattern.permute.xlu0 0
    %700 = vperm.xlu0 %699, %v606
    %v701 = vpop.permute.xlu0 %700
    %704 = vset.pattern.permute.xlu0 0
    %705 = vperm.xlu0 %704, %v607
    %v706 = vpop.permute.xlu0 %705
    %709 = vset.pattern.permute.xlu0 0
    %710 = vperm.xlu0 %709, %v608
    %v711 = vpop.permute.xlu0 %710
    %714 = vset.pattern.permute.xlu0 0
    %715 = vperm.xlu0 %714, %v609
    %v716 = vpop.permute.xlu0 %715
    %719 = vset.pattern.permute.xlu0 0
    %720 = vperm.xlu0 %719, %v610
    %v721 = vpop.permute.xlu0 %720
    %724 = vset.pattern.permute.xlu0 0
    %725 = vperm.xlu0 %724, %v611
    %v726 = vpop.permute.xlu0 %725
    %729 = vset.pattern.permute.xlu0 0
    %730 = vperm.xlu0 %729, %v612
    %v731 = vpop.permute.xlu0 %730
    %734 = vset.pattern.permute.xlu0 0
    %735 = vperm.xlu0 %734, %v613
    %v736 = vpop.permute.xlu0 %735
    %739 = vset.pattern.permute.xlu0 0
    %740 = vperm.xlu0 %739, %v614
    %v741 = vpop.permute.xlu0 %740
    %744 = vset.pattern.permute.xlu0 0
    %745 = vperm.xlu0 %744, %v615
    %v746 = vpop.permute.xlu0 %745
    %749 = vset.pattern.permute.xlu0 0
    %750 = vperm.xlu0 %749, %v616
    %v751 = vpop.permute.xlu0 %750
    %754 = vset.pattern.permute.xlu0 0
    %755 = vperm.xlu0 %754, %v617
    %v756 = vpop.permute.xlu0 %755
    %759 = vset.pattern.permute.xlu0 0
    %760 = vperm.xlu0 %759, %v618
    %v761 = vpop.permute.xlu0 %760
    %764 = vset.pattern.permute.xlu0 0
    %765 = vperm.xlu0 %764, %v619
    %v766 = vpop.permute.xlu0 %765
    %769 = vset.pattern.permute.xlu0 0
    %770 = vperm.xlu0 %769, %v620
    %v771 = vpop.permute.xlu0 %770
    %774 = vset.pattern.permute.xlu0 0
    %775 = vperm.xlu0 %774, %v621
    %v776 = vpop.permute.xlu0 %775
    %779 = vset.pattern.permute.xlu0 0
    %780 = vperm.xlu0 %779, %v622
    %v781 = vpop.permute.xlu0 %780
    %v815 = vunpack.c.l.b16 %v543
    %v816 = vunpack.c.h.b16 %v543
    %v817 = vunpack.c.l.b16 %v544
    %v818 = vunpack.c.h.b16 %v544
    %v819 = vunpack.c.l.b16 %v545
    %v820 = vunpack.c.h.b16 %v545
    %v821 = vunpack.c.l.b16 %v546
    %v822 = vunpack.c.h.b16 %v546
    %v823 = vunpack.c.l.b16 %v547
    %v824 = vunpack.c.h.b16 %v547
    %v825 = vunpack.c.l.b16 %v548
    %v826 = vunpack.c.h.b16 %v548
    %v827 = vunpack.c.l.b16 %v549
    %v828 = vunpack.c.h.b16 %v549
    %v829 = vunpack.c.l.b16 %v550
    %v830 = vunpack.c.h.b16 %v550
    %v831 = vunpack.c.l.b16 %v551
    %v832 = vunpack.c.h.b16 %v551
    %v833 = vunpack.c.l.b16 %v552
    %v834 = vunpack.c.h.b16 %v552
    %v835 = vunpack.c.l.b16 %v553
    %v836 = vunpack.c.h.b16 %v553
    %v837 = vunpack.c.l.b16 %v554
    %v838 = vunpack.c.h.b16 %v554
    %v839 = vunpack.c.l.b16 %v555
    %v840 = vunpack.c.h.b16 %v555
    %v841 = vunpack.c.l.b16 %v556
    %v842 = vunpack.c.h.b16 %v556
    %v843 = vunpack.c.l.b16 %v557
    %v844 = vunpack.c.h.b16 %v557
    %v845 = vunpack.c.l.b16 %v558
    %v846 = vunpack.c.h.b16 %v558
    %v847 = vunpack.c.l.b16 %v559
    %v848 = vunpack.c.h.b16 %v559
    %v849 = vunpack.c.l.b16 %v560
    %v850 = vunpack.c.h.b16 %v560
    %v851 = vunpack.c.l.b16 %v561
    %v852 = vunpack.c.h.b16 %v561
    %v853 = vunpack.c.l.b16 %v562
    %v854 = vunpack.c.h.b16 %v562
    %v855 = vunpack.c.l.b16 %v563
    %v856 = vunpack.c.h.b16 %v563
    %v857 = vunpack.c.l.b16 %v564
    %v858 = vunpack.c.h.b16 %v564
    %v859 = vunpack.c.l.b16 %v565
    %v860 = vunpack.c.h.b16 %v565
    %v861 = vunpack.c.l.b16 %v566
    %v862 = vunpack.c.h.b16 %v566
    %v863 = vunpack.c.l.b16 %v567
    %v864 = vunpack.c.h.b16 %v567
    %v865 = vunpack.c.l.b16 %v568
    %v866 = vunpack.c.h.b16 %v568
    %v867 = vunpack.c.l.b16 %v569
    %v868 = vunpack.c.h.b16 %v569
    %v869 = vunpack.c.l.b16 %v570
    %v870 = vunpack.c.h.b16 %v570
    %v871 = vunpack.c.l.b16 %v571
    %v872 = vunpack.c.h.b16 %v571
    %v873 = vunpack.c.l.b16 %v572
    %v874 = vunpack.c.h.b16 %v572
    %v875 = vunpack.c.l.b16 %v573
    %v876 = vunpack.c.h.b16 %v573
    %v877 = vunpack.c.l.b16 %v574
    %v878 = vunpack.c.h.b16 %v574
    %v879 = vpack.c.b16 %v817, %v815
    %v880 = vpack.c.b16 %v818, %v816
    %v881 = vpack.c.b16 %v821, %v819
    %v882 = vpack.c.b16 %v822, %v820
    %v883 = vpack.c.b16 %v825, %v823
    %v884 = vpack.c.b16 %v826, %v824
    %v885 = vpack.c.b16 %v829, %v827
    %v886 = vpack.c.b16 %v830, %v828
    %v887 = vpack.c.b16 %v833, %v831
    %v888 = vpack.c.b16 %v834, %v832
    %v889 = vpack.c.b16 %v837, %v835
    %v890 = vpack.c.b16 %v838, %v836
    %v891 = vpack.c.b16 %v841, %v839
    %v892 = vpack.c.b16 %v842, %v840
    %v893 = vpack.c.b16 %v845, %v843
    %v894 = vpack.c.b16 %v846, %v844
    %v895 = vpack.c.b16 %v849, %v847
    %v896 = vpack.c.b16 %v850, %v848
    %v897 = vpack.c.b16 %v853, %v851
    %v898 = vpack.c.b16 %v854, %v852
    %v899 = vpack.c.b16 %v857, %v855
    %v900 = vpack.c.b16 %v858, %v856
    %v901 = vpack.c.b16 %v861, %v859
    %v902 = vpack.c.b16 %v862, %v860
    %v903 = vpack.c.b16 %v865, %v863
    %v904 = vpack.c.b16 %v866, %v864
    %v905 = vpack.c.b16 %v869, %v867
    %v906 = vpack.c.b16 %v870, %v868
    %v907 = vpack.c.b16 %v873, %v871
    %v908 = vpack.c.b16 %v874, %v872
    %v909 = vpack.c.b16 %v877, %v875
    %v910 = vpack.c.b16 %v878, %v876
    %943 = vmatpush.bf16.msra.mxu0 %v582
    %944 = vmatpush.bf16.msra.mxu0 %v581
    %945 = vmatpush.bf16.msra.mxu0 %v580
    %946 = vmatpush.bf16.msra.mxu0 %v579
    %947 = vmatpush.bf16.msra.mxu0 %v578
    %948 = vmatpush.bf16.msra.mxu0 %v577
    %949 = vmatpush.bf16.msra.mxu0 %v576
    %950 = vmatpush.bf16.msra.mxu0 %v575
    %951 = vmatmul.bf16.gmra.mxu0 %v879
    %v952 = vpop.f32.mrf.mxu0
    %v953 = vadd.f32 %v626, %v952
    %v954 = vpop.f32.mrf.mxu0
    %v955 = vadd.f32 %v631, %v954
    %956 = vmatmul.bf16.gmra.mxu0 %v881
    %v957 = vpop.f32.mrf.mxu0
    %v958 = vadd.f32 %v636, %v957
    %v959 = vpop.f32.mrf.mxu0
    %v960 = vadd.f32 %v641, %v959
    %961 = vmatmul.bf16.gmra.mxu0 %v883
    %v962 = vpop.f32.mrf.mxu0
    %v963 = vadd.f32 %v646, %v962
    %v964 = vpop.f32.mrf.mxu0
    %v965 = vadd.f32 %v651, %v964
    %966 = vmatmul.bf16.gmra.mxu0 %v885
    %v967 = vpop.f32.mrf.mxu0
    %v968 = vadd.f32 %v656, %v967
    %v969 = vpop.f32.mrf.mxu0
    %v970 = vadd.f32 %v661, %v969
    %971 = vmatmul.bf16.gmra.mxu0 %v887
    %v972 = vpop.f32.mrf.mxu0
    %v973 = vadd.f32 %v666, %v972
    %v974 = vpop.f32.mrf.mxu0
    %v975 = vadd.f32 %v671, %v974
    %976 = vmatmul.bf16.gmra.mxu0 %v889
    %v977 = vpop.f32.mrf.mxu0
    %v978 = vadd.f32 %v676, %v977
    %v979 = vpop.f32.mrf.mxu0
    %v980 = vadd.f32 %v681, %v979
    %981 = vmatmul.bf16.gmra.mxu0 %v891
    %v982 = vpop.f32.mrf.mxu0
    %v983 = vadd.f32 %v686, %v982
    %v984 = vpop.f32.mrf.mxu0
    %v985 = vadd.f32 %v691, %v984
    %986 = vmatmul.bf16.gmra.mxu0 %v893
    %v987 = vpop.f32.mrf.mxu0
    %v988 = vadd.f32 %v696, %v987
    %v989 = vpop.f32.mrf.mxu0
    %v990 = vadd.f32 %v701, %v989
    %991 = vmatmul.bf16.gmra.mxu0 %v895
    %v992 = vpop.f32.mrf.mxu0
    %v993 = vadd.f32 %v706, %v992
    %v994 = vpop.f32.mrf.mxu0
    %v995 = vadd.f32 %v711, %v994
    %996 = vmatmul.bf16.gmra.mxu0 %v897
    %v997 = vpop.f32.mrf.mxu0
    %v998 = vadd.f32 %v716, %v997
    %v999 = vpop.f32.mrf.mxu0
    %v1000 = vadd.f32 %v721, %v999
    %1001 = vmatmul.bf16.gmra.mxu0 %v899
    %v1002 = vpop.f32.mrf.mxu0
    %v1003 = vadd.f32 %v726, %v1002
    %v1004 = vpop.f32.mrf.mxu0
    %v1005 = vadd.f32 %v731, %v1004
    %1006 = vmatmul.bf16.gmra.mxu0 %v901
    %v1007 = vpop.f32.mrf.mxu0
    %v1008 = vadd.f32 %v736, %v1007
    %v1009 = vpop.f32.mrf.mxu0
    %v1010 = vadd.f32 %v741, %v1009
    %1011 = vmatmul.bf16.gmra.mxu0 %v903
    %v1012 = vpop.f32.mrf.mxu0
    %v1013 = vadd.f32 %v746, %v1012
    %v1014 = vpop.f32.mrf.mxu0
    %v1015 = vadd.f32 %v751, %v1014
    %1016 = vmatmul.bf16.gmra.mxu0 %v905
    %v1017 = vpop.f32.mrf.mxu0
    %v1018 = vadd.f32 %v756, %v1017
    %v1019 = vpop.f32.mrf.mxu0
    %v1020 = vadd.f32 %v761, %v1019
    %1021 = vmatmul.bf16.gmra.mxu0 %v907
    %v1022 = vpop.f32.mrf.mxu0
    %v1023 = vadd.f32 %v766, %v1022
    %v1024 = vpop.f32.mrf.mxu0
    %v1025 = vadd.f32 %v771, %v1024
    %1026 = vmatmul.bf16.gmra.mxu0 %v909
    %v1027 = vpop.f32.mrf.mxu0
    %v1028 = vadd.f32 %v776, %v1027
    %v1029 = vpop.f32.mrf.mxu0
    %v1030 = vadd.f32 %v781, %v1029
    %1031 = vdwg.mxu0
    %1032 = vmatpush.bf16.msra.mxu0 %v590
    %1033 = vmatpush.bf16.msra.mxu0 %v589
    %1034 = vmatpush.bf16.msra.mxu0 %v588
    %1035 = vmatpush.bf16.msra.mxu0 %v587
    %1036 = vmatpush.bf16.msra.mxu0 %v586
    %1037 = vmatpush.bf16.msra.mxu0 %v585
    %1038 = vmatpush.bf16.msra.mxu0 %v584
    %1039 = vmatpush.bf16.msra.mxu0 %v583
    %1040 = vmatmul.bf16.gmra.mxu0 %v880
    %v1041 = vpop.f32.mrf.mxu0
    %v1042 = vadd.f32 %v953, %v1041
    %v1043 = vpop.f32.mrf.mxu0
    %v1044 = vadd.f32 %v955, %v1043
    %1045 = vmatmul.bf16.gmra.mxu0 %v882
    %v1046 = vpop.f32.mrf.mxu0
    %v1047 = vadd.f32 %v958, %v1046
    %v1048 = vpop.f32.mrf.mxu0
    %v1049 = vadd.f32 %v960, %v1048
    %1050 = vmatmul.bf16.gmra.mxu0 %v884
    %v1051 = vpop.f32.mrf.mxu0
    %v1052 = vadd.f32 %v963, %v1051
    %v1053 = vpop.f32.mrf.mxu0
    %v1054 = vadd.f32 %v965, %v1053
    %1055 = vmatmul.bf16.gmra.mxu0 %v886
    %v1056 = vpop.f32.mrf.mxu0
    %v1057 = vadd.f32 %v968, %v1056
    %v1058 = vpop.f32.mrf.mxu0
    %v1059 = vadd.f32 %v970, %v1058
    %1060 = vmatmul.bf16.gmra.mxu0 %v888
    %v1061 = vpop.f32.mrf.mxu0
    %v1062 = vadd.f32 %v973, %v1061
    %v1063 = vpop.f32.mrf.mxu0
    %v1064 = vadd.f32 %v975, %v1063
    %1065 = vmatmul.bf16.gmra.mxu0 %v890
    %v1066 = vpop.f32.mrf.mxu0
    %v1067 = vadd.f32 %v978, %v1066
    %v1068 = vpop.f32.mrf.mxu0
    %v1069 = vadd.f32 %v980, %v1068
    %1070 = vmatmul.bf16.gmra.mxu0 %v892
    %v1071 = vpop.f32.mrf.mxu0
    %v1072 = vadd.f32 %v983, %v1071
    %v1073 = vpop.f32.mrf.mxu0
    %v1074 = vadd.f32 %v985, %v1073
    %1075 = vmatmul.bf16.gmra.mxu0 %v894
    %v1076 = vpop.f32.mrf.mxu0
    %v1077 = vadd.f32 %v988, %v1076
    %v1078 = vpop.f32.mrf.mxu0
    %v1079 = vadd.f32 %v990, %v1078
    %1080 = vmatmul.bf16.gmra.mxu0 %v896
    %v1081 = vpop.f32.mrf.mxu0
    %v1082 = vadd.f32 %v993, %v1081
    %v1083 = vpop.f32.mrf.mxu0
    %v1084 = vadd.f32 %v995, %v1083
    %1085 = vmatmul.bf16.gmra.mxu0 %v898
    %v1086 = vpop.f32.mrf.mxu0
    %v1087 = vadd.f32 %v998, %v1086
    %v1088 = vpop.f32.mrf.mxu0
    %v1089 = vadd.f32 %v1000, %v1088
    %1090 = vmatmul.bf16.gmra.mxu0 %v900
    %v1091 = vpop.f32.mrf.mxu0
    %v1092 = vadd.f32 %v1003, %v1091
    %v1093 = vpop.f32.mrf.mxu0
    %v1094 = vadd.f32 %v1005, %v1093
    %1095 = vmatmul.bf16.gmra.mxu0 %v902
    %v1096 = vpop.f32.mrf.mxu0
    %v1097 = vadd.f32 %v1008, %v1096
    %v1098 = vpop.f32.mrf.mxu0
    %v1099 = vadd.f32 %v1010, %v1098
    %1100 = vmatmul.bf16.gmra.mxu0 %v904
    %v1101 = vpop.f32.mrf.mxu0
    %v1102 = vadd.f32 %v1013, %v1101
    %v1103 = vpop.f32.mrf.mxu0
    %v1104 = vadd.f32 %v1015, %v1103
    %1105 = vmatmul.bf16.gmra.mxu0 %v906
    %v1106 = vpop.f32.mrf.mxu0
    %v1107 = vadd.f32 %v1018, %v1106
    %v1108 = vpop.f32.mrf.mxu0
    %v1109 = vadd.f32 %v1020, %v1108
    %1110 = vmatmul.bf16.gmra.mxu0 %v908
    %v1111 = vpop.f32.mrf.mxu0
    %v1112 = vadd.f32 %v1023, %v1111
    %v1113 = vpop.f32.mrf.mxu0
    %v1114 = vadd.f32 %v1025, %v1113
    %1115 = vmatmul.bf16.gmra.mxu0 %v910
    %v1116 = vpop.f32.mrf.mxu0
    %v1117 = vadd.f32 %v1028, %v1116
    %v1118 = vpop.f32.mrf.mxu0
    %v1119 = vadd.f32 %v1030, %v1118
    %1120 = vdwg.mxu0
    %v1121 = vmul.f32 %v1042, 0.01
    %v1122 = vmul.f32 %v1044, 0.01
    %v1123 = vmul.f32 %v1047, 0.01
    %v1124 = vmul.f32 %v1049, 0.01
    %v1125 = vmul.f32 %v1052, 0.01
    %v1126 = vmul.f32 %v1054, 0.01
    %v1127 = vmul.f32 %v1057, 0.01
    %v1128 = vmul.f32 %v1059, 0.01
    %v1129 = vmul.f32 %v1062, 0.01
    %v1130 = vmul.f32 %v1064, 0.01
    %v1131 = vmul.f32 %v1067, 0.01
    %v1132 = vmul.f32 %v1069, 0.01
    %v1133 = vmul.f32 %v1072, 0.01
    %v1134 = vmul.f32 %v1074, 0.01
    %v1135 = vmul.f32 %v1077, 0.01
    %v1136 = vmul.f32 %v1079, 0.01
    %v1137 = vmul.f32 %v1082, 0.01
    %v1138 = vmul.f32 %v1084, 0.01
    %v1139 = vmul.f32 %v1087, 0.01
    %v1140 = vmul.f32 %v1089, 0.01
    %v1141 = vmul.f32 %v1092, 0.01
    %v1142 = vmul.f32 %v1094, 0.01
    %v1143 = vmul.f32 %v1097, 0.01
    %v1144 = vmul.f32 %v1099, 0.01
    %v1145 = vmul.f32 %v1102, 0.01
    %v1146 = vmul.f32 %v1104, 0.01
    %v1147 = vmul.f32 %v1107, 0.01
    %v1148 = vmul.f32 %v1109, 0.01
    %v1149 = vmul.f32 %v1112, 0.01
    %v1150 = vmul.f32 %v1114, 0.01
    %v1151 = vmul.f32 %v1117, 0.01
    %v1152 = vmul.f32 %v1119, 0.01
    %v1153 = vmax.f32 %v1042, %v1121
    %v1154 = vmax.f32 %v1044, %v1122
    %v1155 = vmax.f32 %v1047, %v1123
    %v1156 = vmax.f32 %v1049, %v1124
    %v1157 = vmax.f32 %v1052, %v1125
    %v1158 = vmax.f32 %v1054, %v1126
    %v1159 = vmax.f32 %v1057, %v1127
    %v1160 = vmax.f32 %v1059, %v1128
    %v1161 = vmax.f32 %v1062, %v1129
    %v1162 = vmax.f32 %v1064, %v1130
    %v1163 = vmax.f32 %v1067, %v1131
    %v1164 = vmax.f32 %v1069, %v1132
    %v1165 = vmax.f32 %v1072, %v1133
    %v1166 = vmax.f32 %v1074, %v1134
    %v1167 = vmax.f32 %v1077, %v1135
    %v1168 = vmax.f32 %v1079, %v1136
    %v1169 = vmax.f32 %v1082, %v1137
    %v1170 = vmax.f32 %v1084, %v1138
    %v1171 = vmax.f32 %v1087, %v1139
    %v1172 = vmax.f32 %v1089, %v1140
    %v1173 = vmax.f32 %v1092, %v1141
    %v1174 = vmax.f32 %v1094, %v1142
    %v1175 = vmax.f32 %v1097, %v1143
    %v1176 = vmax.f32 %v1099, %v1144
    %v1177 = vmax.f32 %v1102, %v1145
    %v1178 = vmax.f32 %v1104, %v1146
    %v1179 = vmax.f32 %v1107, %v1147
    %v1180 = vmax.f32 %v1109, %v1148
    %v1181 = vmax.f32 %v1112, %v1149
    %v1182 = vmax.f32 %v1114, %v1150
    %v1183 = vmax.f32 %v1117, %v1151
    %v1184 = vmax.f32 %v1119, %v1152
    %v1185 = vld [vmem:[%s5] sm:$0xff]
    %v1186 = vld [vmem:[%s5 + $0x8] sm:$0xff]
    %v1187 = vld [vmem:[%s5 + $0x10] sm:$0xff]
    %v1188 = vld [vmem:[%s5 + $0x18] sm:$0xff]
    %v1189 = vld [vmem:[%s5 + $0x20] sm:$0xff]
    %v1190 = vld [vmem:[%s5 + $0x28] sm:$0xff]
    %v1191 = vld [vmem:[%s5 + $0x30] sm:$0xff]
    %v1192 = vld [vmem:[%s5 + $0x38] sm:$0xff]
    %v1193 = vld [vmem:[%s5 + $0x40] sm:$0xff]
    %v1194 = vld [vmem:[%s5 + $0x48] sm:$0xff]
    %v1195 = vld [vmem:[%s5 + $0x50] sm:$0xff]
    %v1196 = vld [vmem:[%s5 + $0x58] sm:$0xff]
    %v1197 = vld [vmem:[%s5 + $0x60] sm:$0xff]
    %v1198 = vld [vmem:[%s5 + $0x68] sm:$0xff]
    %v1199 = vld [vmem:[%s5 + $0x70] sm:$0xff]
    %v1200 = vld [vmem:[%s5 + $0x78] sm:$0xff]
    %v1201 = vld [vmem:[%s5 + $0x80] sm:$0xff]
    %v1202 = vld [vmem:[%s5 + $0x88] sm:$0xff]
    %v1203 = vld [vmem:[%s5 + $0x90] sm:$0xff]
    %v1204 = vld [vmem:[%s5 + $0x98] sm:$0xff]
    %v1205 = vld [vmem:[%s5 + $0xa0] sm:$0xff]
    %v1206 = vld [vmem:[%s5 + $0xa8] sm:$0xff]
    %v1207 = vld [vmem:[%s5 + $0xb0] sm:$0xff]
    %v1208 = vld [vmem:[%s5 + $0xb8] sm:$0xff]
    %v1209 = vld [vmem:[%s5 + $0xc0] sm:$0xff]
    %v1210 = vld [vmem:[%s5 + $0xc8] sm:$0xff]
    %v1211 = vld [vmem:[%s5 + $0xd0] sm:$0xff]
    %v1212 = vld [vmem:[%s5 + $0xd8] sm:$0xff]
    %v1213 = vld [vmem:[%s5 + $0xe0] sm:$0xff]
    %v1214 = vld [vmem:[%s5 + $0xe8] sm:$0xff]
    %v1215 = vld [vmem:[%s5 + $0xf0] sm:$0xff]
    %v1216 = vld [vmem:[%s5 + $0xf8] sm:$0xff]
    %1218 = vset.pattern.permute.xlu0 0
    %1219 = vperm.xlu0 %1218, %v1185
    %v1220 = vpop.permute.xlu0 %1219
    %1223 = vset.pattern.permute.xlu0 0
    %1224 = vperm.xlu0 %1223, %v1186
    %v1225 = vpop.permute.xlu0 %1224
    %1228 = vset.pattern.permute.xlu0 0
    %1229 = vperm.xlu0 %1228, %v1187
    %v1230 = vpop.permute.xlu0 %1229
    %1233 = vset.pattern.permute.xlu0 0
    %1234 = vperm.xlu0 %1233, %v1188
    %v1235 = vpop.permute.xlu0 %1234
    %1238 = vset.pattern.permute.xlu0 0
    %1239 = vperm.xlu0 %1238, %v1189
    %v1240 = vpop.permute.xlu0 %1239
    %1243 = vset.pattern.permute.xlu0 0
    %1244 = vperm.xlu0 %1243, %v1190
    %v1245 = vpop.permute.xlu0 %1244
    %1248 = vset.pattern.permute.xlu0 0
    %1249 = vperm.xlu0 %1248, %v1191
    %v1250 = vpop.permute.xlu0 %1249
    %1253 = vset.pattern.permute.xlu0 0
    %1254 = vperm.xlu0 %1253, %v1192
    %v1255 = vpop.permute.xlu0 %1254
    %1258 = vset.pattern.permute.xlu0 0
    %1259 = vperm.xlu0 %1258, %v1193
    %v1260 = vpop.permute.xlu0 %1259
    %1263 = vset.pattern.permute.xlu0 0
    %1264 = vperm.xlu0 %1263, %v1194
    %v1265 = vpop.permute.xlu0 %1264
    %1268 = vset.pattern.permute.xlu0 0
    %1269 = vperm.xlu0 %1268, %v1195
    %v1270 = vpop.permute.xlu0 %1269
    %1273 = vset.pattern.permute.xlu0 0
    %1274 = vperm.xlu0 %1273, %v1196
    %v1275 = vpop.permute.xlu0 %1274
    %1278 = vset.pattern.permute.xlu0 0
    %1279 = vperm.xlu0 %1278, %v1197
    %v1280 = vpop.permute.xlu0 %1279
    %1283 = vset.pattern.permute.xlu0 0
    %1284 = vperm.xlu0 %1283, %v1198
    %v1285 = vpop.permute.xlu0 %1284
    %1288 = vset.pattern.permute.xlu0 0
    %1289 = vperm.xlu0 %1288, %v1199
    %v1290 = vpop.permute.xlu0 %1289
    %1293 = vset.pattern.permute.xlu0 0
    %1294 = vperm.xlu0 %1293, %v1200
    %v1295 = vpop.permute.xlu0 %1294
    %1298 = vset.pattern.permute.xlu0 0
    %1299 = vperm.xlu0 %1298, %v1201
    %v1300 = vpop.permute.xlu0 %1299
    %1303 = vset.pattern.permute.xlu0 0
    %1304 = vperm.xlu0 %1303, %v1202
    %v1305 = vpop.permute.xlu0 %1304
    %1308 = vset.pattern.permute.xlu0 0
    %1309 = vperm.xlu0 %1308, %v1203
    %v1310 = vpop.permute.xlu0 %1309
    %1313 = vset.pattern.permute.xlu0 0
    %1314 = vperm.xlu0 %1313, %v1204
    %v1315 = vpop.permute.xlu0 %1314
    %1318 = vset.pattern.permute.xlu0 0
    %1319 = vperm.xlu0 %1318, %v1205
    %v1320 = vpop.permute.xlu0 %1319
    %1323 = vset.pattern.permute.xlu0 0
    %1324 = vperm.xlu0 %1323, %v1206
    %v1325 = vpop.permute.xlu0 %1324
    %1328 = vset.pattern.permute.xlu0 0
    %1329 = vperm.xlu0 %1328, %v1207
    %v1330 = vpop.permute.xlu0 %1329
    %1333 = vset.pattern.permute.xlu0 0
    %1334 = vperm.xlu0 %1333, %v1208
    %v1335 = vpop.permute.xlu0 %1334
    %1338 = vset.pattern.permute.xlu0 0
    %1339 = vperm.xlu0 %1338, %v1209
    %v1340 = vpop.permute.xlu0 %1339
    %1343 = vset.pattern.permute.xlu0 0
    %1344 = vperm.xlu0 %1343, %v1210
    %v1345 = vpop.permute.xlu0 %1344
    %1348 = vset.pattern.permute.xlu0 0
    %1349 = vperm.xlu0 %1348, %v1211
    %v1350 = vpop.permute.xlu0 %1349
    %1353 = vset.pattern.permute.xlu0 0
    %1354 = vperm.xlu0 %1353, %v1212
    %v1355 = vpop.permute.xlu0 %1354
    %1358 = vset.pattern.permute.xlu0 0
    %1359 = vperm.xlu0 %1358, %v1213
    %v1360 = vpop.permute.xlu0 %1359
    %1363 = vset.pattern.permute.xlu0 0
    %1364 = vperm.xlu0 %1363, %v1214
    %v1365 = vpop.permute.xlu0 %1364
    %1368 = vset.pattern.permute.xlu0 0
    %1369 = vperm.xlu0 %1368, %v1215
    %v1370 = vpop.permute.xlu0 %1369
    %1373 = vset.pattern.permute.xlu0 0
    %1374 = vperm.xlu0 %1373, %v1216
    %v1375 = vpop.permute.xlu0 %1374
    %v1377 = vmul.f32 %v1153, %v1220
    %v1378 = vmul.f32 %v1154, %v1225
    %v1379 = vmul.f32 %v1155, %v1230
    %v1380 = vmul.f32 %v1156, %v1235
    %v1381 = vmul.f32 %v1157, %v1240
    %v1382 = vmul.f32 %v1158, %v1245
    %v1383 = vmul.f32 %v1159, %v1250
    %v1384 = vmul.f32 %v1160, %v1255
    %v1385 = vmul.f32 %v1161, %v1260
    %v1386 = vmul.f32 %v1162, %v1265
    %v1387 = vmul.f32 %v1163, %v1270
    %v1388 = vmul.f32 %v1164, %v1275
    %v1389 = vmul.f32 %v1165, %v1280
    %v1390 = vmul.f32 %v1166, %v1285
    %v1391 = vmul.f32 %v1167, %v1290
    %v1392 = vmul.f32 %v1168, %v1295
    %v1393 = vmul.f32 %v1169, %v1300
    %v1394 = vmul.f32 %v1170, %v1305
    %v1395 = vmul.f32 %v1171, %v1310
    %v1396 = vmul.f32 %v1172, %v1315
    %v1397 = vmul.f32 %v1173, %v1320
    %v1398 = vmul.f32 %v1174, %v1325
    %v1399 = vmul.f32 %v1175, %v1330
    %v1400 = vmul.f32 %v1176, %v1335
    %v1401 = vmul.f32 %v1177, %v1340
    %v1402 = vmul.f32 %v1178, %v1345
    %v1403 = vmul.f32 %v1179, %v1350
    %v1404 = vmul.f32 %v1180, %v1355
    %v1405 = vmul.f32 %v1181, %v1360
    %v1406 = vmul.f32 %v1182, %v1365
    %v1407 = vmul.f32 %v1183, %v1370
    %v1408 = vmul.f32 %v1184, %v1375
    %vm1409 = vcmask 64512
    %v1410 = vsel %vm1409, %v1377, 0.0
    %v1411 = vsel %vm1409, %v1378, 0.0
    %v1412 = vadd.f32 %v1410, %v1411
    %v1413 = vsel %vm1409, %v1379, 0.0
    %v1414 = vadd.f32 %v1412, %v1413
    %v1415 = vsel %vm1409, %v1380, 0.0
    %v1416 = vadd.f32 %v1414, %v1415
    %v1417 = vsel %vm1409, %v1381, 0.0
    %v1418 = vadd.f32 %v1416, %v1417
    %v1419 = vsel %vm1409, %v1382, 0.0
    %v1420 = vadd.f32 %v1418, %v1419
    %v1421 = vsel %vm1409, %v1383, 0.0
    %v1422 = vadd.f32 %v1420, %v1421
    %v1423 = vsel %vm1409, %v1384, 0.0
    %v1424 = vadd.f32 %v1422, %v1423
    %v1425 = vsel %vm1409, %v1385, 0.0
    %v1426 = vadd.f32 %v1424, %v1425
    %v1427 = vsel %vm1409, %v1386, 0.0
    %v1428 = vadd.f32 %v1426, %v1427
    %v1429 = vsel %vm1409, %v1387, 0.0
    %v1430 = vadd.f32 %v1428, %v1429
    %v1431 = vsel %vm1409, %v1388, 0.0
    %v1432 = vadd.f32 %v1430, %v1431
    %v1433 = vsel %vm1409, %v1389, 0.0
    %v1434 = vadd.f32 %v1432, %v1433
    %v1435 = vsel %vm1409, %v1390, 0.0
    %v1436 = vadd.f32 %v1434, %v1435
    %v1437 = vsel %vm1409, %v1391, 0.0
    %v1438 = vadd.f32 %v1436, %v1437
    %v1439 = vsel %vm1409, %v1392, 0.0
    %v1440 = vadd.f32 %v1438, %v1439
    %v1441 = vsel %vm1409, %v1393, 0.0
    %v1442 = vadd.f32 %v1440, %v1441
    %v1443 = vsel %vm1409, %v1394, 0.0
    %v1444 = vadd.f32 %v1442, %v1443
    %v1445 = vsel %vm1409, %v1395, 0.0
    %v1446 = vadd.f32 %v1444, %v1445
    %v1447 = vsel %vm1409, %v1396, 0.0
    %v1448 = vadd.f32 %v1446, %v1447
    %v1449 = vsel %vm1409, %v1397, 0.0
    %v1450 = vadd.f32 %v1448, %v1449
    %v1451 = vsel %vm1409, %v1398, 0.0
    %v1452 = vadd.f32 %v1450, %v1451
    %v1453 = vsel %vm1409, %v1399, 0.0
    %v1454 = vadd.f32 %v1452, %v1453
    %v1455 = vsel %vm1409, %v1400, 0.0
    %v1456 = vadd.f32 %v1454, %v1455
    %v1457 = vsel %vm1409, %v1401, 0.0
    %v1458 = vadd.f32 %v1456, %v1457
    %v1459 = vsel %vm1409, %v1402, 0.0
    %v1460 = vadd.f32 %v1458, %v1459
    %v1461 = vsel %vm1409, %v1403, 0.0
    %v1462 = vadd.f32 %v1460, %v1461
    %v1463 = vsel %vm1409, %v1404, 0.0
    %v1464 = vadd.f32 %v1462, %v1463
    %v1465 = vsel %vm1409, %v1405, 0.0
    %v1466 = vadd.f32 %v1464, %v1465
    %v1467 = vsel %vm1409, %v1406, 0.0
    %v1468 = vadd.f32 %v1466, %v1467
    %v1469 = vsel %vm1409, %v1407, 0.0
    %v1470 = vadd.f32 %v1468, %v1469
    %v1471 = vsel %vm1409, %v1408, 0.0
    %v1472 = vadd.f32 %v1470, %v1471
    %v1473 = vrot.slane %v1472, 4
    %v1474 = vadd.f32 %v1472, %v1473
    %v1475 = vrot.slane %v1474, 2
    %v1476 = vadd.f32 %v1474, %v1475
    %v1477 = vrot.slane %v1476, 1
    %v1478 = vadd.f32 %v1476, %v1477
    %s1479 = sld [smem:[#allocation2]]
    %v1480 = vstv %s1479
    %v1481 = vadd.f32 %v1478, %v1480
    %vm1482 = vcmask 57344
    %1483 = vst.msk [vmem:[#allocation3] sm:$0x1] %vm1482, %v1481
    // Predicated region
    $region30: #{tpu_custom_call.1} parent=1 // pred_check
      _
    $region31: #{tpu_custom_call.1} parent=1 // pred_check_branch
      %1485 = sbr.rel (0) target = $region33
    $region32: #{tpu_custom_call.1} parent=1 // pred_region
      %1487 = vsyncadd [#allocation4], 0
      %s1489 = sshll.u32 [#allocation3], 4
      %s1490 = int_to_ptr.vmem [resolvable:$true] %s1489
      %s1491 = sshll.u32 %s7, 4
      %s1492 = int_to_ptr.hbm [resolvable:$true] %s1491
      %1494 = dma.vmem_to_hbm [thread:$0]  %s1490, 16, %s1492, [#allocation4]
    $region33: #{tpu_custom_call.1} parent=1 // pred_fallthru
      _
    // Predicated region
    $region34: #{tpu_custom_call.1} parent=1 // pred_check
      _
    $region35: #{tpu_custom_call.1} parent=1 // pred_check_branch
      %1496 = sbr.rel (0) target = $region37
    $region36: #{tpu_custom_call.1} parent=1 // pred_region
      %1498 = dma.done [#allocation4], 16
    $region37: #{tpu_custom_call.1} parent=1 // pred_fallthru
      _
    %1499 = vsyncpa [#allocation4], 1

</llo_original>
